<compile_context>
chip_gen: v7x
topology: tpu7x:2x2x1
jax: 0.10.0
libtpu: 0.0.40
codegen_flags: <defaults>
</compile_context>

<pallas_src>
import functools

import jax
import jax.numpy as jnp
from jax.experimental import pallas as pl
from jax.experimental.pallas import tpu as pltpu

OUT_C = 4
HW = 3 * 3                    # 9 spatial positions
FEAT = HW * OUT_C             # 36 = LayerNorm / Linear-in dim
OUT_DIM = 6
LN_EPS = 1e-5
LEAKY_SLOPE = 0.01            # nn.LeakyReLU() default


def eval_head_kernel(x_ref, scal_ref, gb_ref, fin_ref, out_ref):
    # x_ref:    (HW, TILE_B)          spatial-major input, batch on lanes
    # scal_ref: (1, 8)                [w0, w1, w2, w3, mean_w, sum_w2,
    #                                  9*var_w, 0]   (conv-weight moments)
    # gb_ref:   (OUT_C, HW, 2)        per-channel LayerNorm gamma / beta
    # fin_ref:  (OUT_C, OUT_DIM, HW)  per-channel slice of the final Linear
    # out_ref:  (OUT_DIM, TILE_B)
    x = x_ref[...]                                   # (9, T) f32

    mean_w = scal_ref[:, 4:5]                        # (1, 1)
    sum_w2 = scal_ref[:, 5:6]                        # (1, 1)
    var_w9 = scal_ref[:, 6:7]                        # (1, 1) = 9 * var(w)

    # LayerNorm statistics over the 36 conv features, computed from the 9
    # spatial values only (1x1 conv => o2[c*9+j] = w_c * x_j):
    #   mu        = mean_w * mean_x
    #   36 * var  = sum_w2 * sum_j (x_j - mean_x)^2 + 9*var_w*mean_x^2
    # Both terms are sums of squares -> numerically equivalent to the centered
    # two-pass variance (no catastrophic cancellation, never negative).
    mean_x = jnp.sum(x, axis=0, keepdims=True) * (1.0 / HW)        # (1, T)
    u = x - mean_x                                                 # (9, T)
    ssq = jnp.sum(u * u, axis=0, keepdims=True)                    # (1, T)
    mu = mean_w * mean_x                                           # (1, T)
    var = (sum_w2 * ssq + var_w9 * (mean_x * mean_x)) * (1.0 / FEAT)
    r = jax.lax.rsqrt(var + LN_EPS)                                # (1, T) EUP

    # Per output channel: normalize + affine + LeakyReLU + project.
    #   o2_c - mu = w_c * u + (w_c - mean_w) * mean_x
    acc = jnp.zeros(out_ref.shape, jnp.float32)
    for c in range(OUT_C):                           # unrolled, 4 iterations
        w_c = scal_ref[:, c:c + 1]                   # (1, 1)
        gamma_c = gb_ref[c, :, 0:1]                  # (9, 1)
        beta_c = gb_ref[c, :, 1:2]                   # (9, 1)
        d = w_c * u + (w_c - mean_w) * mean_x        # (9, T) == o2_c - mu
        y = d * r * gamma_c + beta_c                 # (9, T)
        y = jnp.where(y >= 0, y, LEAKY_SLOPE * y)    # LeakyReLU(0.01)
        acc = acc + jnp.dot(fin_ref[c], y,           # (6,9)@(9,T) -> (6,T)
                            preferred_element_type=jnp.float32)
    out_ref[...] = acc


def _round_up(x, m):
    return ((x + m - 1) // m) * m


@functools.partial(jax.jit, static_argnames=("tile_b_max",))
def eval_head_forward_fm(x_fm, conv_w, ln_gamma, ln_beta, fin_w, *,
                         tile_b_max=32768):
    """Feature-major entry: x_fm is (9, B) f32; returns (6, B) f32."""
    hw, B = x_fm.shape
    assert hw == HW

    # ---- batch tiling (batch sits on the lane axis) ----
    Bp = _round_up(max(B, 1), 128)
    tile_b = min(tile_b_max, Bp)
    num_tiles = -(-Bp // tile_b)
    if num_tiles < 2 and Bp >= 256:
        num_tiles = 2                       # feed both TensorCores on v7x
    tile_b = _round_up(-(-Bp // num_tiles), 128)
    Bp = tile_b * num_tiles

    x_p = jnp.pad(x_fm.astype(jnp.float32), ((0, 0), (0, Bp - B)))  # (9, Bp)

    # ---- parameter packing (tiny, fused by XLA) ----
    wc = conv_w.reshape(OUT_C).astype(jnp.float32)                   # (4,)
    mean_w = jnp.mean(wc)
    sum_w2 = jnp.sum(wc * wc)
    var_w9 = jnp.float32(HW) * jnp.sum((wc - mean_w) ** 2)
    scal = jnp.concatenate(
        [wc, jnp.stack([mean_w, sum_w2, var_w9,
                        jnp.zeros((), jnp.float32)])]).reshape(1, 8)

    gb = jnp.stack([ln_gamma.astype(jnp.float32).reshape(OUT_C, HW),
                    ln_beta.astype(jnp.float32).reshape(OUT_C, HW)],
                   axis=-1)                                          # (4, 9, 2)
    fin3 = fin_w.astype(jnp.float32).reshape(OUT_DIM, OUT_C, HW)
    fin3 = fin3.transpose(1, 0, 2)                                   # (4, 6, 9)

    grid_spec = pltpu.PrefetchScalarGridSpec(
        num_scalar_prefetch=0,
        grid=(num_tiles,),
        in_specs=[
            pl.BlockSpec((HW, tile_b), lambda i: (0, i)),           # batch-tiled
            pl.BlockSpec((1, 8), lambda i: (0, 0)),                 # resident
            pl.BlockSpec((OUT_C, HW, 2), lambda i: (0, 0, 0)),      # resident
            pl.BlockSpec((OUT_C, OUT_DIM, HW), lambda i: (0, 0, 0)),
        ],
        out_specs=pl.BlockSpec((OUT_DIM, tile_b), lambda i: (0, i)),
    )

    # Explicit VMEM budget: double-buffered in/out blocks plus ~6 (9, T) f32
    # temporaries, 2x headroom, floored at 32 MiB (v5e scoped default is only
    # 16 MiB), capped at 48 MiB (v7x has 64 MiB physical VMEM).
    per_tile = tile_b * 4 * (2 * HW + 2 * OUT_DIM + 6 * HW)
    vmem_bytes = int(min(48 << 20, max(32 << 20, 2 * per_tile)))

    out_fm = pl.pallas_call(
        eval_head_kernel,
        out_shape=jax.ShapeDtypeStruct((OUT_DIM, Bp), jnp.float32),
        grid_spec=grid_spec,
        compiler_params=pltpu.CompilerParams(
            dimension_semantics=("parallel",),
            vmem_limit_bytes=vmem_bytes),
    )(x_p, scal, gb, fin3)

    return out_fm[:, :B]


@functools.partial(jax.jit, static_argnames=("tile_b_max",))
def eval_head_forward(x_nchw, conv_w, ln_gamma, ln_beta, fin_w, *,
                      tile_b_max=32768):
    """x_nchw: (B, 1, 3, 3) f32. Returns (B, 6) f32 (PyTorch-module layout).

    Layout glue only: producers that can emit (9, B) / consume (6, B) should
    call eval_head_forward_fm directly and skip both transposes.
    """
    B = x_nchw.shape[0]
    assert x_nchw.shape[1:] == (1, 3, 3)
    x_fm = x_nchw.reshape(B, HW).T                                   # (9, B)
    out_fm = eval_head_forward_fm(x_fm, conv_w, ln_gamma, ln_beta, fin_w,
                                  tile_b_max=tile_b_max)
    return out_fm.T                                                  # (B, 6)


def eval_head_reference(x_nchw, conv_w, ln_gamma, ln_beta, fin_w):
    """Pure-JAX reference mirroring the PyTorch forward."""
    B = x_nchw.shape[0]
    o1 = conv_w.reshape(1, OUT_C, 1, 1) * x_nchw                     # (B,4,3,3)
    o2 = o1.reshape(B, FEAT)                                         # flatten(1)
    mu = jnp.mean(o2, axis=-1, keepdims=True)
    var = jnp.mean((o2 - mu) ** 2, axis=-1, keepdims=True)
    xn = (o2 - mu) / jnp.sqrt(var + LN_EPS)
    y = xn * ln_gamma.reshape(1, FEAT) + ln_beta.reshape(1, FEAT)
    y = jnp.where(y >= 0, y, LEAKY_SLOPE * y)
    return y @ fin_w.T                                               # (B, 6)


if __name__ == "__main__":
    key = jax.random.PRNGKey(0)
    k_x, k_conv, k_fin, k_g, k_b, k_x2 = jax.random.split(key, 6)

    # Deterministic synthetic parameters (shapes match nn.Module __init__).
    conv_w = jax.random.normal(k_conv, (OUT_C, 1, 1, 1), jnp.float32) * 0.5
    fin_w = jax.random.normal(k_fin, (OUT_DIM, FEAT), jnp.float32) * 0.1
    ln_gamma = 1.0 + 0.1 * jax.random.normal(k_g, (FEAT,), jnp.float32)
    ln_beta = 0.1 * jax.random.normal(k_b, (FEAT,), jnp.float32)

    # Small-batch check (B=2 -> single 128-lane tile).
    B = 2
    x = jax.random.normal(k_x, (B, 1, 3, 3), jnp.float32)
    out = jax.block_until_ready(
        eval_head_forward(x, conv_w, ln_gamma, ln_beta, fin_w))
    ref = eval_head_reference(x, conv_w, ln_gamma, ln_beta, fin_w)
    assert out.shape == (B, OUT_DIM)
    assert jnp.allclose(out, ref, atol=1e-4, rtol=1e-4)

    # Multi-tile check (B=300 -> 2 grid tiles of 256 lanes; exercises the
    # >=2-tile / batch-padding path used for v7x megacore sharding).
    B2 = 300
    x2 = jax.random.normal(k_x2, (B2, 1, 3, 3), jnp.float32)
    out2 = jax.block_until_ready(
        eval_head_forward(x2, conv_w, ln_gamma, ln_beta, fin_w))
    ref2 = eval_head_reference(x2, conv_w, ln_gamma, ln_beta, fin_w)
    assert out2.shape == (B2, OUT_DIM)
    assert jnp.allclose(out2, ref2, atol=1e-4, rtol=1e-4)

    print("KERNEL_OK")
</pallas_src>

<mosaic_0001>
module attributes {stable_mosaic.version = 11 : i64} {
  func.func @eval_head_kernel(%arg0: i32, %arg1: memref<9x128xf32, #tpu.memory_space<vmem>>, %arg2: memref<1x8xf32, #tpu.memory_space<vmem>>, %arg3: memref<4x9x2xf32, #tpu.memory_space<vmem>>, %arg4: memref<4x6x9xf32, #tpu.memory_space<vmem>>, %arg5: memref<6x128xf32, #tpu.memory_space<vmem>>) attributes {dimension_semantics = [#tpu.dimension_semantics<parallel>], iteration_bounds = array<i64: 1>, scalar_prefetch = 0 : i64, scratch_operands = 0 : i64, tpu.core_type = #tpu.core_type<tc>, window_params = [{transform_indices = @transform_0, window_bounds = array<i64: 9, 128>}, {pipeline_mode = #tpu.pipeline_mode<synchronous>, transform_indices = @transform_1, window_bounds = array<i64: 1, 8>}, {pipeline_mode = #tpu.pipeline_mode<synchronous>, transform_indices = @transform_2, window_bounds = array<i64: 4, 9, 2>}, {pipeline_mode = #tpu.pipeline_mode<synchronous>, transform_indices = @transform_3, window_bounds = array<i64: 4, 6, 9>}, {transform_indices = @transform_4, window_bounds = array<i64: 6, 128>}]} {
    %c0 = arith.constant 0 : index
    %c0_0 = arith.constant 0 : index
    %0 = vector.load %arg1[%c0, %c0_0] : memref<9x128xf32, #tpu.memory_space<vmem>>, vector<9x128xf32>
    %c0_1 = arith.constant 0 : index
    %c4 = arith.constant 4 : index
    %1 = vector.load %arg2[%c0_1, %c4] : memref<1x8xf32, #tpu.memory_space<vmem>>, vector<1x1xf32>
    %c0_2 = arith.constant 0 : index
    %c5 = arith.constant 5 : index
    %2 = vector.load %arg2[%c0_2, %c5] : memref<1x8xf32, #tpu.memory_space<vmem>>, vector<1x1xf32>
    %c0_3 = arith.constant 0 : index
    %c6 = arith.constant 6 : index
    %3 = vector.load %arg2[%c0_3, %c6] : memref<1x8xf32, #tpu.memory_space<vmem>>, vector<1x1xf32>
    %cst = arith.constant dense<0.000000e+00> : vector<128xf32>
    %4 = vector.multi_reduction <add>, %0, %cst [0] : vector<9x128xf32> to vector<128xf32>
    %5 = vector.shape_cast %4 : vector<128xf32> to vector<1x128xf32>
    %cst_4 = arith.constant 0.111111112 : f32
    %6 = vector.broadcast %cst_4 : f32 to vector<1x128xf32>
    %7 = arith.mulf %5, %6 : vector<1x128xf32>
    %8 = vector.broadcast %7 : vector<1x128xf32> to vector<9x128xf32>
    %9 = arith.subf %0, %8 : vector<9x128xf32>
    %10 = arith.mulf %9, %9 : vector<9x128xf32>
    %cst_5 = arith.constant dense<0.000000e+00> : vector<128xf32>
    %11 = vector.multi_reduction <add>, %10, %cst_5 [0] : vector<9x128xf32> to vector<128xf32>
    %12 = vector.shape_cast %11 : vector<128xf32> to vector<1x128xf32>
    %13 = vector.broadcast %2 : vector<1x1xf32> to vector<1x128xf32>
    %14 = arith.mulf %13, %12 : vector<1x128xf32>
    %15 = arith.mulf %7, %7 : vector<1x128xf32>
    %16 = vector.broadcast %3 : vector<1x1xf32> to vector<1x128xf32>
    %17 = arith.mulf %16, %15 : vector<1x128xf32>
    %18 = arith.addf %14, %17 : vector<1x128xf32>
    %cst_6 = arith.constant 0.027777778 : f32
    %19 = vector.broadcast %cst_6 : f32 to vector<1x128xf32>
    %20 = arith.mulf %18, %19 : vector<1x128xf32>
    %cst_7 = arith.constant 9.99999974E-6 : f32
    %21 = vector.broadcast %cst_7 : f32 to vector<1x128xf32>
    %22 = arith.addf %20, %21 : vector<1x128xf32>
    %23 = math.rsqrt %22 : vector<1x128xf32>
    %cst_8 = arith.constant 0.000000e+00 : f32
    %24 = vector.broadcast %cst_8 : f32 to vector<6x128xf32>
    %c0_9 = arith.constant 0 : index
    %c0_10 = arith.constant 0 : index
    %25 = vector.load %arg2[%c0_9, %c0_10] : memref<1x8xf32, #tpu.memory_space<vmem>>, vector<1x1xf32>
    %c0_11 = arith.constant 0 : index
    %c0_12 = arith.constant 0 : index
    %c0_13 = arith.constant 0 : index
    %26 = vector.load %arg3[%c0_11, %c0_12, %c0_13] : memref<4x9x2xf32, #tpu.memory_space<vmem>>, vector<1x9x1xf32>
    %27 = vector.shape_cast %26 : vector<1x9x1xf32> to vector<9x1xf32>
    %c0_14 = arith.constant 0 : index
    %c0_15 = arith.constant 0 : index
    %c1 = arith.constant 1 : index
    %28 = vector.load %arg3[%c0_14, %c0_15, %c1] : memref<4x9x2xf32, #tpu.memory_space<vmem>>, vector<1x9x1xf32>
    %29 = vector.shape_cast %28 : vector<1x9x1xf32> to vector<9x1xf32>
    %30 = vector.broadcast %25 : vector<1x1xf32> to vector<9x128xf32>
    %31 = arith.mulf %30, %9 : vector<9x128xf32>
    %32 = arith.subf %25, %1 : vector<1x1xf32>
    %33 = vector.broadcast %32 : vector<1x1xf32> to vector<1x128xf32>
    %34 = arith.mulf %33, %7 : vector<1x128xf32>
    %35 = vector.broadcast %34 : vector<1x128xf32> to vector<9x128xf32>
    %36 = arith.addf %31, %35 : vector<9x128xf32>
    %37 = vector.broadcast %23 : vector<1x128xf32> to vector<9x128xf32>
    %38 = arith.mulf %36, %37 : vector<9x128xf32>
    %39 = vector.broadcast %27 : vector<9x1xf32> to vector<9x128xf32>
    %40 = arith.mulf %38, %39 : vector<9x128xf32>
    %41 = vector.broadcast %29 : vector<9x1xf32> to vector<9x128xf32>
    %42 = arith.addf %40, %41 : vector<9x128xf32>
    %cst_16 = arith.constant 0.000000e+00 : f32
    %43 = vector.broadcast %cst_16 : f32 to vector<9x128xf32>
    %44 = arith.cmpf oge, %42, %43 : vector<9x128xf32>
    %cst_17 = arith.constant 0.00999999977 : f32
    %45 = vector.broadcast %cst_17 : f32 to vector<9x128xf32>
    %46 = arith.mulf %45, %42 : vector<9x128xf32>
    %47 = arith.select %44, %42, %46 : vector<9x128xi1>, vector<9x128xf32>
    %c0_18 = arith.constant 0 : index
    %c0_19 = arith.constant 0 : index
    %c0_20 = arith.constant 0 : index
    %48 = vector.load %arg4[%c0_18, %c0_19, %c0_20] : memref<4x6x9xf32, #tpu.memory_space<vmem>>, vector<1x6x9xf32>
    %49 = vector.shape_cast %48 : vector<1x6x9xf32> to vector<6x9xf32>
    %cst_21 = arith.constant dense<0.000000e+00> : vector<6x128xf32>
    %50 = tpu.matmul %49, %47, %cst_21 {dimension_numbers = #tpu.dot_dimension_numbers<[1], [0], [0], [1], [0, 0, 1, 1], [], []>} : vector<6x9xf32>, vector<9x128xf32>, vector<6x128xf32> -> vector<6x128xf32>
    %51 = arith.addf %24, %50 : vector<6x128xf32>
    %c0_22 = arith.constant 0 : index
    %c1_23 = arith.constant 1 : index
    %52 = vector.load %arg2[%c0_22, %c1_23] : memref<1x8xf32, #tpu.memory_space<vmem>>, vector<1x1xf32>
    %c1_24 = arith.constant 1 : index
    %c0_25 = arith.constant 0 : index
    %c0_26 = arith.constant 0 : index
    %53 = vector.load %arg3[%c1_24, %c0_25, %c0_26] : memref<4x9x2xf32, #tpu.memory_space<vmem>>, vector<1x9x1xf32>
    %54 = vector.shape_cast %53 : vector<1x9x1xf32> to vector<9x1xf32>
    %c1_27 = arith.constant 1 : index
    %c0_28 = arith.constant 0 : index
    %c1_29 = arith.constant 1 : index
    %55 = vector.load %arg3[%c1_27, %c0_28, %c1_29] : memref<4x9x2xf32, #tpu.memory_space<vmem>>, vector<1x9x1xf32>
    %56 = vector.shape_cast %55 : vector<1x9x1xf32> to vector<9x1xf32>
    %57 = vector.broadcast %52 : vector<1x1xf32> to vector<9x128xf32>
    %58 = arith.mulf %57, %9 : vector<9x128xf32>
    %59 = arith.subf %52, %1 : vector<1x1xf32>
    %60 = vector.broadcast %59 : vector<1x1xf32> to vector<1x128xf32>
    %61 = arith.mulf %60, %7 : vector<1x128xf32>
    %62 = vector.broadcast %61 : vector<1x128xf32> to vector<9x128xf32>
    %63 = arith.addf %58, %62 : vector<9x128xf32>
    %64 = vector.broadcast %23 : vector<1x128xf32> to vector<9x128xf32>
    %65 = arith.mulf %63, %64 : vector<9x128xf32>
    %66 = vector.broadcast %54 : vector<9x1xf32> to vector<9x128xf32>
    %67 = arith.mulf %65, %66 : vector<9x128xf32>
    %68 = vector.broadcast %56 : vector<9x1xf32> to vector<9x128xf32>
    %69 = arith.addf %67, %68 : vector<9x128xf32>
    %cst_30 = arith.constant 0.000000e+00 : f32
    %70 = vector.broadcast %cst_30 : f32 to vector<9x128xf32>
    %71 = arith.cmpf oge, %69, %70 : vector<9x128xf32>
    %cst_31 = arith.constant 0.00999999977 : f32
    %72 = vector.broadcast %cst_31 : f32 to vector<9x128xf32>
    %73 = arith.mulf %72, %69 : vector<9x128xf32>
    %74 = arith.select %71, %69, %73 : vector<9x128xi1>, vector<9x128xf32>
    %c1_32 = arith.constant 1 : index
    %c0_33 = arith.constant 0 : index
    %c0_34 = arith.constant 0 : index
    %75 = vector.load %arg4[%c1_32, %c0_33, %c0_34] : memref<4x6x9xf32, #tpu.memory_space<vmem>>, vector<1x6x9xf32>
    %76 = vector.shape_cast %75 : vector<1x6x9xf32> to vector<6x9xf32>
    %cst_35 = arith.constant dense<0.000000e+00> : vector<6x128xf32>
    %77 = tpu.matmul %76, %74, %cst_35 {dimension_numbers = #tpu.dot_dimension_numbers<[1], [0], [0], [1], [0, 0, 1, 1], [], []>} : vector<6x9xf32>, vector<9x128xf32>, vector<6x128xf32> -> vector<6x128xf32>
    %78 = arith.addf %51, %77 : vector<6x128xf32>
    %c0_36 = arith.constant 0 : index
    %c2 = arith.constant 2 : index
    %79 = vector.load %arg2[%c0_36, %c2] : memref<1x8xf32, #tpu.memory_space<vmem>>, vector<1x1xf32>
    %c2_37 = arith.constant 2 : index
    %c0_38 = arith.constant 0 : index
    %c0_39 = arith.constant 0 : index
    %80 = vector.load %arg3[%c2_37, %c0_38, %c0_39] : memref<4x9x2xf32, #tpu.memory_space<vmem>>, vector<1x9x1xf32>
    %81 = vector.shape_cast %80 : vector<1x9x1xf32> to vector<9x1xf32>
    %c2_40 = arith.constant 2 : index
    %c0_41 = arith.constant 0 : index
    %c1_42 = arith.constant 1 : index
    %82 = vector.load %arg3[%c2_40, %c0_41, %c1_42] : memref<4x9x2xf32, #tpu.memory_space<vmem>>, vector<1x9x1xf32>
    %83 = vector.shape_cast %82 : vector<1x9x1xf32> to vector<9x1xf32>
    %84 = vector.broadcast %79 : vector<1x1xf32> to vector<9x128xf32>
    %85 = arith.mulf %84, %9 : vector<9x128xf32>
    %86 = arith.subf %79, %1 : vector<1x1xf32>
    %87 = vector.broadcast %86 : vector<1x1xf32> to vector<1x128xf32>
    %88 = arith.mulf %87, %7 : vector<1x128xf32>
    %89 = vector.broadcast %88 : vector<1x128xf32> to vector<9x128xf32>
    %90 = arith.addf %85, %89 : vector<9x128xf32>
    %91 = vector.broadcast %23 : vector<1x128xf32> to vector<9x128xf32>
    %92 = arith.mulf %90, %91 : vector<9x128xf32>
    %93 = vector.broadcast %81 : vector<9x1xf32> to vector<9x128xf32>
    %94 = arith.mulf %92, %93 : vector<9x128xf32>
    %95 = vector.broadcast %83 : vector<9x1xf32> to vector<9x128xf32>
    %96 = arith.addf %94, %95 : vector<9x128xf32>
    %cst_43 = arith.constant 0.000000e+00 : f32
    %97 = vector.broadcast %cst_43 : f32 to vector<9x128xf32>
    %98 = arith.cmpf oge, %96, %97 : vector<9x128xf32>
    %cst_44 = arith.constant 0.00999999977 : f32
    %99 = vector.broadcast %cst_44 : f32 to vector<9x128xf32>
    %100 = arith.mulf %99, %96 : vector<9x128xf32>
    %101 = arith.select %98, %96, %100 : vector<9x128xi1>, vector<9x128xf32>
    %c2_45 = arith.constant 2 : index
    %c0_46 = arith.constant 0 : index
    %c0_47 = arith.constant 0 : index
    %102 = vector.load %arg4[%c2_45, %c0_46, %c0_47] : memref<4x6x9xf32, #tpu.memory_space<vmem>>, vector<1x6x9xf32>
    %103 = vector.shape_cast %102 : vector<1x6x9xf32> to vector<6x9xf32>
    %cst_48 = arith.constant dense<0.000000e+00> : vector<6x128xf32>
    %104 = tpu.matmul %103, %101, %cst_48 {dimension_numbers = #tpu.dot_dimension_numbers<[1], [0], [0], [1], [0, 0, 1, 1], [], []>} : vector<6x9xf32>, vector<9x128xf32>, vector<6x128xf32> -> vector<6x128xf32>
    %105 = arith.addf %78, %104 : vector<6x128xf32>
    %c0_49 = arith.constant 0 : index
    %c3 = arith.constant 3 : index
    %106 = vector.load %arg2[%c0_49, %c3] : memref<1x8xf32, #tpu.memory_space<vmem>>, vector<1x1xf32>
    %c3_50 = arith.constant 3 : index
    %c0_51 = arith.constant 0 : index
    %c0_52 = arith.constant 0 : index
    %107 = vector.load %arg3[%c3_50, %c0_51, %c0_52] : memref<4x9x2xf32, #tpu.memory_space<vmem>>, vector<1x9x1xf32>
    %108 = vector.shape_cast %107 : vector<1x9x1xf32> to vector<9x1xf32>
    %c3_53 = arith.constant 3 : index
    %c0_54 = arith.constant 0 : index
    %c1_55 = arith.constant 1 : index
    %109 = vector.load %arg3[%c3_53, %c0_54, %c1_55] : memref<4x9x2xf32, #tpu.memory_space<vmem>>, vector<1x9x1xf32>
    %110 = vector.shape_cast %109 : vector<1x9x1xf32> to vector<9x1xf32>
    %111 = vector.broadcast %106 : vector<1x1xf32> to vector<9x128xf32>
    %112 = arith.mulf %111, %9 : vector<9x128xf32>
    %113 = arith.subf %106, %1 : vector<1x1xf32>
    %114 = vector.broadcast %113 : vector<1x1xf32> to vector<1x128xf32>
    %115 = arith.mulf %114, %7 : vector<1x128xf32>
    %116 = vector.broadcast %115 : vector<1x128xf32> to vector<9x128xf32>
    %117 = arith.addf %112, %116 : vector<9x128xf32>
    %118 = vector.broadcast %23 : vector<1x128xf32> to vector<9x128xf32>
    %119 = arith.mulf %117, %118 : vector<9x128xf32>
    %120 = vector.broadcast %108 : vector<9x1xf32> to vector<9x128xf32>
    %121 = arith.mulf %119, %120 : vector<9x128xf32>
    %122 = vector.broadcast %110 : vector<9x1xf32> to vector<9x128xf32>
    %123 = arith.addf %121, %122 : vector<9x128xf32>
    %cst_56 = arith.constant 0.000000e+00 : f32
    %124 = vector.broadcast %cst_56 : f32 to vector<9x128xf32>
    %125 = arith.cmpf oge, %123, %124 : vector<9x128xf32>
    %cst_57 = arith.constant 0.00999999977 : f32
    %126 = vector.broadcast %cst_57 : f32 to vector<9x128xf32>
    %127 = arith.mulf %126, %123 : vector<9x128xf32>
    %128 = arith.select %125, %123, %127 : vector<9x128xi1>, vector<9x128xf32>
    %c3_58 = arith.constant 3 : index
    %c0_59 = arith.constant 0 : index
    %c0_60 = arith.constant 0 : index
    %129 = vector.load %arg4[%c3_58, %c0_59, %c0_60] : memref<4x6x9xf32, #tpu.memory_space<vmem>>, vector<1x6x9xf32>
    %130 = vector.shape_cast %129 : vector<1x6x9xf32> to vector<6x9xf32>
    %cst_61 = arith.constant dense<0.000000e+00> : vector<6x128xf32>
    %131 = tpu.matmul %130, %128, %cst_61 {dimension_numbers = #tpu.dot_dimension_numbers<[1], [0], [0], [1], [0, 0, 1, 1], [], []>} : vector<6x9xf32>, vector<9x128xf32>, vector<6x128xf32> -> vector<6x128xf32>
    %132 = arith.addf %105, %131 : vector<6x128xf32>
    %c0_62 = arith.constant 0 : index
    %c0_63 = arith.constant 0 : index
    %133 = vector.load %arg5[%c0_62, %c0_63] : memref<6x128xf32, #tpu.memory_space<vmem>>, vector<6x128xf32>
    tpu.vector_store %arg5[%c0_62, %c0_63], %132 {strides = array<i32>} : memref<6x128xf32, #tpu.memory_space<vmem>>, vector<6x128xf32>,
    return
  }
  func.func @transform_0(%arg0: i32) -> (i32, i32) {
    %c0_i32 = arith.constant 0 : i32
    %c0_i32_0 = arith.constant 0 : i32
    return %c0_i32, %arg0 : i32, i32
  }
  func.func @transform_1(%arg0: i32) -> (i32, i32) {
    %c0_i32 = arith.constant 0 : i32
    %c0_i32_0 = arith.constant 0 : i32
    %c0_i32_1 = arith.constant 0 : i32
    return %c0_i32, %c0_i32_0 : i32, i32
  }
  func.func @transform_2(%arg0: i32) -> (i32, i32, i32) {
    %c0_i32 = arith.constant 0 : i32
    %c0_i32_0 = arith.constant 0 : i32
    %c0_i32_1 = arith.constant 0 : i32
    %c0_i32_2 = arith.constant 0 : i32
    return %c0_i32, %c0_i32_0, %c0_i32_1 : i32, i32, i32
  }
  func.func @transform_3(%arg0: i32) -> (i32, i32, i32) {
    %c0_i32 = arith.constant 0 : i32
    %c0_i32_0 = arith.constant 0 : i32
    %c0_i32_1 = arith.constant 0 : i32
    %c0_i32_2 = arith.constant 0 : i32
    return %c0_i32, %c0_i32_0, %c0_i32_1 : i32, i32, i32
  }
  func.func @transform_4(%arg0: i32) -> (i32, i32) {
    %c0_i32 = arith.constant 0 : i32
    %c0_i32_0 = arith.constant 0 : i32
    return %c0_i32, %arg0 : i32, i32
  }
}

</mosaic_0001>

<llo_original>
// kernel: eval_head_forward_fm.1
$region0: #{eval_head_forward_fm.1}
  #allocation0 [shape = 'u32[]', space=smem, size = 0x4, offset = 0x4, fixed_abs, tag = 'smem constant byte address 0x4 - core index']
  #allocation1 [shape = 'u32[144,128]{1,0:T(1,128)}', space=vmem, size = 0x12000, scoped, tag = 'internal scratch']
  %s0 = inlined_call_operand.vmem [shape: f32[9,128], index: 0, kind: input, shape index: {}]
  %s1 = inlined_call_operand.vmem [shape: f32[1,8], index: 1, kind: input, shape index: {}]
  %s2 = inlined_call_operand.vmem [shape: f32[4,9,2], index: 2, kind: input, shape index: {}]
  %s3 = inlined_call_operand.vmem [shape: f32[4,6,9], index: 3, kind: input, shape index: {}]
  %s4 = inlined_call_operand.vmem [shape: f32[6,128], index: 4, kind: output, shape index: {}]
  %s5 = sld [smem:[#allocation0]]
  $region26: #{eval_head_forward_fm.1} parent=0
    _
  %s7 = ssub.s32 1, %s5
  %s8 = scalar_select 0, %s7, %s5
  // Predicated region
  $region2: #{eval_head_forward_fm.1} parent=0 // pred_check
    _
  $region3: #{eval_head_forward_fm.1} parent=0 // pred_check_branch
    %10 = sbr.rel (0) target = $region5
  $region4: #{eval_head_forward_fm.1} parent=0 // pred_region
    _
  $region5: #{eval_head_forward_fm.1} parent=0 // pred_fallthru
    _
  // Predicated region
  $region6: #{eval_head_forward_fm.1} parent=0 // pred_check
    _
  $region7: #{eval_head_forward_fm.1} parent=0 // pred_check_branch
    %12 = sbr.rel (0) target = $region9
  $region8: #{eval_head_forward_fm.1} parent=0 // pred_region
    _
  $region9: #{eval_head_forward_fm.1} parent=0 // pred_fallthru
    _
  // Predicated region
  $region10: #{eval_head_forward_fm.1} parent=0 // pred_check
    _
  $region11: #{eval_head_forward_fm.1} parent=0 // pred_check_branch
    %14 = sbr.rel (0) target = $region13
  $region12: #{eval_head_forward_fm.1} parent=0 // pred_region
    _
  $region13: #{eval_head_forward_fm.1} parent=0 // pred_fallthru
    _
  // Predicated region
  $region14: #{eval_head_forward_fm.1} parent=0 // pred_check
    _
  $region15: #{eval_head_forward_fm.1} parent=0 // pred_check_branch
    %16 = sbr.rel (0) target = $region17
  $region16: #{eval_head_forward_fm.1} parent=0 // pred_region
    _
  $region17: #{eval_head_forward_fm.1} parent=0 // pred_fallthru
    _
  %v17 = vld [vmem:[%s0] sm:$0xff]
  %v18 = vld [vmem:[%s0 + $0x8] sm:$0x1]
  %v19 = vld [vmem:[%s1] sm:$0x1]
  %vm20 = vcmask 1040384
  %v21 = vsel %vm20, %v18, 0.0
  %v22 = vadd.f32 %v17, %v21
  %v23 = vrot.slane %v22, 4
  %v24 = vadd.f32 %v22, %v23
  %v25 = vrot.slane %v24, 2
  %v26 = vadd.f32 %v24, %v25
  %v27 = vrot.slane %v26, 1
  %v28 = vadd.f32 %v26, %v27
  %v29 = vmul.f32 %v28, 0.11111111
  %v30 = vsub.f32 %v17, %v29
  %v31 = vsub.f32 %v18, %v29
  %v32 = vmul.f32 %v30, %v30
  %v33 = vmul.f32 %v31, %v31
  %v34 = vsel %vm20, %v33, 0.0
  %v35 = vadd.f32 %v32, %v34
  %v36 = vrot.slane %v35, 4
  %v37 = vadd.f32 %v35, %v36
  %v38 = vrot.slane %v37, 2
  %v39 = vadd.f32 %v37, %v38
  %v40 = vrot.slane %v39, 1
  %v41 = vadd.f32 %v39, %v40
  %43 = vset.pattern.permute.xlu0 5
  %44 = vperm.xlu0 %43, %v19
  %v45 = vpop.permute.xlu0 %44
  %v47 = vlaneseq
  %v48 = vshrl.u32 %v47, 7
  %v49 = vsub.s32 0, %v48
  %v50 = vrot.slane %v45, %v49
  %v51 = vmul.f32 %v50, %v41
  %v52 = vmul.f32 %v29, %v29
  %53 = vset.pattern.permute.xlu0 6
  %54 = vperm.xlu0 %53, %v19
  %v55 = vpop.permute.xlu0 %54
  %v57 = vlaneseq
  %v58 = vshrl.u32 %v57, 7
  %v59 = vsub.s32 0, %v58
  %v60 = vrot.slane %v55, %v59
  %v61 = vmul.f32 %v60, %v52
  %v62 = vadd.f32 %v51, %v61
  %v63 = vmul.f32 %v62, 0.027777778
  %v64 = vadd.f32 %v63, 1e-05
  %v65 = vrsqrt.pop %v64
  %v66 = vld [vmem:[%s2] sm:$0xff]
  %v67 = vld [vmem:[%s2 + $0x8] sm:$0x1]
  %v68 = vlaneseq
  %v69 = vshrl.u32 %v68, 7
  %v70 = vsub.s32 0, %v69
  %v71 = vrot.slane %v19, %v70
  %72 = vset.pattern.permute.xlu0 0
  %73 = vperm.xlu0 %72, %v71
  %v74 = vpop.permute.xlu0 %73
  %v76 = vmul.f32 %v74, %v30
  %v77 = vmul.f32 %v74, %v31
  %78 = vrot.lane.b32.xlu0 %v19, 124
  %v79 = vpop.permute.xlu0 %78
  %v81 = vsub.f32 %v19, %v79
  %83 = vset.pattern.permute.xlu0 0
  %84 = vperm.xlu0 %83, %v81
  %v85 = vpop.permute.xlu0 %84
  %v87 = vlaneseq
  %v88 = vshrl.u32 %v87, 7
  %v89 = vsub.s32 0, %v88
  %v90 = vrot.slane %v85, %v89
  %v91 = vmul.f32 %v90, %v29
  %v92 = vadd.f32 %v76, %v91
  %v93 = vadd.f32 %v77, %v91
  %v94 = vmul.f32 %v92, %v65
  %v95 = vmul.f32 %v93, %v65
  %97 = vset.pattern.permute.xlu0 0
  %98 = vperm.xlu0 %97, %v66
  %v99 = vpop.permute.xlu0 %98
  %102 = vset.pattern.permute.xlu0 0
  %103 = vperm.xlu0 %102, %v67
  %v104 = vpop.permute.xlu0 %103
  %v106 = vmul.f32 %v94, %v99
  %v107 = vmul.f32 %v95, %v104
  %108 = vset.pattern.permute.xlu0 1
  %109 = vperm.xlu0 %108, %v66
  %v110 = vpop.permute.xlu0 %109
  %112 = vset.pattern.permute.xlu0 1
  %113 = vperm.xlu0 %112, %v67
  %v114 = vpop.permute.xlu0 %113
  %v116 = vadd.f32 %v106, %v110
  %v117 = vadd.f32 %v107, %v114
  %vm118 = vcmp.ge.f32.partialorder %v116, 0.0
  %vm119 = vcmp.ge.f32.partialorder %v117, 0.0
  %v120 = vmul.f32 %v116, 0.01
  %v121 = vmul.f32 %v117, 0.01
  %v122 = vsel %vm118, %v116, %v120
  %v123 = vsel %vm119, %v117, %v121
  %v124 = vld [vmem:[%s3] sm:$0x3f]
  %s125 = scalar_lea.vmem %s2, 16
  %v126 = vld [vmem:[%s125] sm:$0xff]
  %v127 = vld [vmem:[%s125 + $0x8] sm:$0x1]
  %128 = vset.pattern.permute.xlu0 1
  %129 = vperm.xlu0 %128, %v71
  %v130 = vpop.permute.xlu0 %129
  %v132 = vmul.f32 %v130, %v30
  %v133 = vmul.f32 %v130, %v31
  %134 = vrot.lane.b32.xlu0 %v19, 125
  %v135 = vpop.permute.xlu0 %134
  %v137 = vsub.f32 %v19, %v135
  %139 = vset.pattern.permute.xlu0 1
  %140 = vperm.xlu0 %139, %v137
  %v141 = vpop.permute.xlu0 %140
  %v143 = vlaneseq
  %v144 = vshrl.u32 %v143, 7
  %v145 = vsub.s32 0, %v144
  %v146 = vrot.slane %v141, %v145
  %v147 = vmul.f32 %v146, %v29
  %v148 = vadd.f32 %v132, %v147
  %v149 = vadd.f32 %v133, %v147
  %v150 = vmul.f32 %v148, %v65
  %v151 = vmul.f32 %v149, %v65
  %153 = vset.pattern.permute.xlu0 0
  %154 = vperm.xlu0 %153, %v126
  %v155 = vpop.permute.xlu0 %154
  %158 = vset.pattern.permute.xlu0 0
  %159 = vperm.xlu0 %158, %v127
  %v160 = vpop.permute.xlu0 %159
  %v162 = vmul.f32 %v150, %v155
  %v163 = vmul.f32 %v151, %v160
  %164 = vset.pattern.permute.xlu0 1
  %165 = vperm.xlu0 %164, %v126
  %v166 = vpop.permute.xlu0 %165
  %168 = vset.pattern.permute.xlu0 1
  %169 = vperm.xlu0 %168, %v127
  %v170 = vpop.permute.xlu0 %169
  %v172 = vadd.f32 %v162, %v166
  %v173 = vadd.f32 %v163, %v170
  %vm174 = vcmp.ge.f32.partialorder %v172, 0.0
  %vm175 = vcmp.ge.f32.partialorder %v173, 0.0
  %v176 = vmul.f32 %v172, 0.01
  %v177 = vmul.f32 %v173, 0.01
  %v178 = vsel %vm174, %v172, %v176
  %v179 = vsel %vm175, %v173, %v177
  %s180 = scalar_lea.vmem %s3, 8
  %v181 = vld [vmem:[%s180] sm:$0x3f]
  %vm182 = vcmask 72704
  %v184 = vsel %vm182, %v181, 0
  %v187 = vsel %vm20, %v179, 0
  %189 = vmatprep.subr.mxu0 0.0
  %190 = vmatpush1.msra.mxu0 %v178
  %191 = vmatprep.subr.mxu0 0.0
  %192 = vmatpush1.msra.mxu0 %v187
  %193 = vmatprep.subr.mxu0 0.0
  %194 = vmatpush1.msra.mxu0 0.0
  %195 = vmatprep.subr.mxu0 0.0
  %196 = vmatpush1.msra.mxu0 0.0
  %197 = vmatprep.subr.mxu0 0.0
  %198 = vmatpush1.msra.mxu0 0.0
  %199 = vmatprep.subr.mxu0 0.0
  %200 = vmatpush1.msra.mxu0 0.0
  %201 = vmatprep.subr.mxu0 0.0
  %202 = vmatpush1.msra.mxu0 0.0
  %203 = vmatprep.subr.mxu0 0.0
  %204 = vmatpush1.msra.mxu0 0.0
  %205 = vmatprep.subr.mxu0 0.0
  %206 = vmatpush1.msra.mxu0 0.0
  %207 = vmatprep.subr.mxu0 0.0
  %208 = vmatpush1.msra.mxu0 0.0
  %209 = vmatprep.subr.mxu0 0.0
  %210 = vmatpush1.msra.mxu0 0.0
  %211 = vmatprep.subr.mxu0 0.0
  %212 = vmatpush1.msra.mxu0 0.0
  %213 = vmatprep.subr.mxu0 0.0
  %214 = vmatpush1.msra.mxu0 0.0
  %215 = vmatprep.subr.mxu0 0.0
  %216 = vmatpush1.msra.mxu0 0.0
  %217 = vmatprep.subr.mxu0 0.0
  %218 = vmatpush1.msra.mxu0 0.0
  %219 = vmatprep.subr.mxu0 0.0
  %220 = vmatpush1.msra.mxu0 0.0
  %221 = vmatprep.subr.mxu0 0.0
  %222 = vmatpush1.msra.mxu0 0.0
  %223 = vmatprep.subr.mxu0 0.0
  %224 = vmatpush1.msra.mxu0 0.0
  %225 = vmatprep.subr.mxu0 0.0
  %226 = vmatpush1.msra.mxu0 0.0
  %227 = vmatprep.subr.mxu0 0.0
  %228 = vmatpush1.msra.mxu0 0.0
  %229 = vmatprep.subr.mxu0 0.0
  %230 = vmatpush1.msra.mxu0 0.0
  %231 = vmatprep.subr.mxu0 0.0
  %232 = vmatpush1.msra.mxu0 0.0
  %233 = vmatprep.subr.mxu0 0.0
  %234 = vmatpush1.msra.mxu0 0.0
  %235 = vmatprep.subr.mxu0 0.0
  %236 = vmatpush1.msra.mxu0 0.0
  %237 = vmatprep.subr.mxu0 0.0
  %238 = vmatpush1.msra.mxu0 0.0
  %239 = vmatprep.subr.mxu0 0.0
  %240 = vmatpush1.msra.mxu0 0.0
  %241 = vmatprep.subr.mxu0 0.0
  %242 = vmatpush1.msra.mxu0 0.0
  %243 = vmatprep.subr.mxu0 0.0
  %244 = vmatpush1.msra.mxu0 0.0
  %245 = vmatprep.subr.mxu0 0.0
  %246 = vmatpush1.msra.mxu0 0.0
  %247 = vmatprep.subr.mxu0 0.0
  %248 = vmatpush1.msra.mxu0 0.0
  %249 = vmatprep.subr.mxu0 0.0
  %250 = vmatpush1.msra.mxu0 0.0
  %251 = vmatprep.subr.mxu0 0.0
  %252 = vmatpush1.msra.mxu0 0.0
  %253 = vmatprep.mubr.f32.mxu0 0.0
  %254 = vmatmul.mubr.f32.gmra.mrb[0].mxu0 %v184
  %v255 = vpop.f32.mrb[0].mxu0
  %v256 = vadd.f32 0.0, %v255
  %v257 = vpop.f32.mrb[0].mxu0
  %258 = vdwg.mxu0
  %v260 = vsel %vm182, %v124, 0
  %v263 = vsel %vm20, %v123, 0
  %265 = vmatprep.subr.mxu0 0.0
  %266 = vmatpush1.msra.mxu0 %v122
  %267 = vmatprep.subr.mxu0 0.0
  %268 = vmatpush1.msra.mxu0 %v263
  %269 = vmatprep.subr.mxu0 0.0
  %270 = vmatpush1.msra.mxu0 0.0
  %271 = vmatprep.subr.mxu0 0.0
  %272 = vmatpush1.msra.mxu0 0.0
  %273 = vmatprep.subr.mxu0 0.0
  %274 = vmatpush1.msra.mxu0 0.0
  %275 = vmatprep.subr.mxu0 0.0
  %276 = vmatpush1.msra.mxu0 0.0
  %277 = vmatprep.subr.mxu0 0.0
  %278 = vmatpush1.msra.mxu0 0.0
  %279 = vmatprep.subr.mxu0 0.0
  %280 = vmatpush1.msra.mxu0 0.0
  %281 = vmatprep.subr.mxu0 0.0
  %282 = vmatpush1.msra.mxu0 0.0
  %283 = vmatprep.subr.mxu0 0.0
  %284 = vmatpush1.msra.mxu0 0.0
  %285 = vmatprep.subr.mxu0 0.0
  %286 = vmatpush1.msra.mxu0 0.0
  %287 = vmatprep.subr.mxu0 0.0
  %288 = vmatpush1.msra.mxu0 0.0
  %289 = vmatprep.subr.mxu0 0.0
  %290 = vmatpush1.msra.mxu0 0.0
  %291 = vmatprep.subr.mxu0 0.0
  %292 = vmatpush1.msra.mxu0 0.0
  %293 = vmatprep.subr.mxu0 0.0
  %294 = vmatpush1.msra.mxu0 0.0
  %295 = vmatprep.subr.mxu0 0.0
  %296 = vmatpush1.msra.mxu0 0.0
  %297 = vmatprep.subr.mxu0 0.0
  %298 = vmatpush1.msra.mxu0 0.0
  %299 = vmatprep.subr.mxu0 0.0
  %300 = vmatpush1.msra.mxu0 0.0
  %301 = vmatprep.subr.mxu0 0.0
  %302 = vmatpush1.msra.mxu0 0.0
  %303 = vmatprep.subr.mxu0 0.0
  %304 = vmatpush1.msra.mxu0 0.0
  %305 = vmatprep.subr.mxu0 0.0
  %306 = vmatpush1.msra.mxu0 0.0
  %307 = vmatprep.subr.mxu0 0.0
  %308 = vmatpush1.msra.mxu0 0.0
  %309 = vmatprep.subr.mxu0 0.0
  %310 = vmatpush1.msra.mxu0 0.0
  %311 = vmatprep.subr.mxu0 0.0
  %312 = vmatpush1.msra.mxu0 0.0
  %313 = vmatprep.subr.mxu0 0.0
  %314 = vmatpush1.msra.mxu0 0.0
  %315 = vmatprep.subr.mxu0 0.0
  %316 = vmatpush1.msra.mxu0 0.0
  %317 = vmatprep.subr.mxu0 0.0
  %318 = vmatpush1.msra.mxu0 0.0
  %319 = vmatprep.subr.mxu0 0.0
  %320 = vmatpush1.msra.mxu0 0.0
  %321 = vmatprep.subr.mxu0 0.0
  %322 = vmatpush1.msra.mxu0 0.0
  %323 = vmatprep.subr.mxu0 0.0
  %324 = vmatpush1.msra.mxu0 0.0
  %325 = vmatprep.subr.mxu0 0.0
  %326 = vmatpush1.msra.mxu0 0.0
  %327 = vmatprep.subr.mxu0 0.0
  %328 = vmatpush1.msra.mxu0 0.0
  %329 = vmatprep.mubr.f32.mxu0 0.0
  %330 = vmatmul.mubr.f32.gmra.mrb[0].mxu0 %v260
  %v331 = vpop.f32.mrb[0].mxu0
  %v332 = vadd.f32 %v256, %v331
  %v333 = vpop.f32.mrb[0].mxu0
  %334 = vdwg.mxu0
  %s335 = scalar_lea.vmem %s2, 32
  %v336 = vld [vmem:[%s335] sm:$0xff]
  %v337 = vld [vmem:[%s335 + $0x8] sm:$0x1]
  %338 = vset.pattern.permute.xlu0 2
  %339 = vperm.xlu0 %338, %v71
  %v340 = vpop.permute.xlu0 %339
  %v342 = vmul.f32 %v340, %v30
  %v343 = vmul.f32 %v340, %v31
  %344 = vrot.lane.b32.xlu0 %v19, 126
  %v345 = vpop.permute.xlu0 %344
  %v347 = vsub.f32 %v19, %v345
  %349 = vset.pattern.permute.xlu0 2
  %350 = vperm.xlu0 %349, %v347
  %v351 = vpop.permute.xlu0 %350
  %v353 = vlaneseq
  %v354 = vshrl.u32 %v353, 7
  %v355 = vsub.s32 0, %v354
  %v356 = vrot.slane %v351, %v355
  %v357 = vmul.f32 %v356, %v29
  %v358 = vadd.f32 %v342, %v357
  %v359 = vadd.f32 %v343, %v357
  %v360 = vmul.f32 %v358, %v65
  %v361 = vmul.f32 %v359, %v65
  %363 = vset.pattern.permute.xlu0 0
  %364 = vperm.xlu0 %363, %v336
  %v365 = vpop.permute.xlu0 %364
  %368 = vset.pattern.permute.xlu0 0
  %369 = vperm.xlu0 %368, %v337
  %v370 = vpop.permute.xlu0 %369
  %v372 = vmul.f32 %v360, %v365
  %v373 = vmul.f32 %v361, %v370
  %374 = vset.pattern.permute.xlu0 1
  %375 = vperm.xlu0 %374, %v336
  %v376 = vpop.permute.xlu0 %375
  %378 = vset.pattern.permute.xlu0 1
  %379 = vperm.xlu0 %378, %v337
  %v380 = vpop.permute.xlu0 %379
  %v382 = vadd.f32 %v372, %v376
  %v383 = vadd.f32 %v373, %v380
  %vm384 = vcmp.ge.f32.partialorder %v382, 0.0
  %vm385 = vcmp.ge.f32.partialorder %v383, 0.0
  %v386 = vmul.f32 %v382, 0.01
  %v387 = vmul.f32 %v383, 0.01
  %v388 = vsel %vm384, %v382, %v386
  %v389 = vsel %vm385, %v383, %v387
  %s390 = scalar_lea.vmem %s3, 16
  %v391 = vld [vmem:[%s390] sm:$0x3f]
  %v393 = vsel %vm182, %v391, 0
  %v396 = vsel %vm20, %v389, 0
  %398 = vmatprep.subr.mxu0 0.0
  %399 = vmatpush1.msra.mxu0 %v388
  %400 = vmatprep.subr.mxu0 0.0
  %401 = vmatpush1.msra.mxu0 %v396
  %402 = vmatprep.subr.mxu0 0.0
  %403 = vmatpush1.msra.mxu0 0.0
  %404 = vmatprep.subr.mxu0 0.0
  %405 = vmatpush1.msra.mxu0 0.0
  %406 = vmatprep.subr.mxu0 0.0
  %407 = vmatpush1.msra.mxu0 0.0
  %408 = vmatprep.subr.mxu0 0.0
  %409 = vmatpush1.msra.mxu0 0.0
  %410 = vmatprep.subr.mxu0 0.0
  %411 = vmatpush1.msra.mxu0 0.0
  %412 = vmatprep.subr.mxu0 0.0
  %413 = vmatpush1.msra.mxu0 0.0
  %414 = vmatprep.subr.mxu0 0.0
  %415 = vmatpush1.msra.mxu0 0.0
  %416 = vmatprep.subr.mxu0 0.0
  %417 = vmatpush1.msra.mxu0 0.0
  %418 = vmatprep.subr.mxu0 0.0
  %419 = vmatpush1.msra.mxu0 0.0
  %420 = vmatprep.subr.mxu0 0.0
  %421 = vmatpush1.msra.mxu0 0.0
  %422 = vmatprep.subr.mxu0 0.0
  %423 = vmatpush1.msra.mxu0 0.0
  %424 = vmatprep.subr.mxu0 0.0
  %425 = vmatpush1.msra.mxu0 0.0
  %426 = vmatprep.subr.mxu0 0.0
  %427 = vmatpush1.msra.mxu0 0.0
  %428 = vmatprep.subr.mxu0 0.0
  %429 = vmatpush1.msra.mxu0 0.0
  %430 = vmatprep.subr.mxu0 0.0
  %431 = vmatpush1.msra.mxu0 0.0
  %432 = vmatprep.subr.mxu0 0.0
  %433 = vmatpush1.msra.mxu0 0.0
  %434 = vmatprep.subr.mxu0 0.0
  %435 = vmatpush1.msra.mxu0 0.0
  %436 = vmatprep.subr.mxu0 0.0
  %437 = vmatpush1.msra.mxu0 0.0
  %438 = vmatprep.subr.mxu0 0.0
  %439 = vmatpush1.msra.mxu0 0.0
  %440 = vmatprep.subr.mxu0 0.0
  %441 = vmatpush1.msra.mxu0 0.0
  %442 = vmatprep.subr.mxu0 0.0
  %443 = vmatpush1.msra.mxu0 0.0
  %444 = vmatprep.subr.mxu0 0.0
  %445 = vmatpush1.msra.mxu0 0.0
  %446 = vmatprep.subr.mxu0 0.0
  %447 = vmatpush1.msra.mxu0 0.0
  %448 = vmatprep.subr.mxu0 0.0
  %449 = vmatpush1.msra.mxu0 0.0
  %450 = vmatprep.subr.mxu0 0.0
  %451 = vmatpush1.msra.mxu0 0.0
  %452 = vmatprep.subr.mxu0 0.0
  %453 = vmatpush1.msra.mxu0 0.0
  %454 = vmatprep.subr.mxu0 0.0
  %455 = vmatpush1.msra.mxu0 0.0
  %456 = vmatprep.subr.mxu0 0.0
  %457 = vmatpush1.msra.mxu0 0.0
  %458 = vmatprep.subr.mxu0 0.0
  %459 = vmatpush1.msra.mxu0 0.0
  %460 = vmatprep.subr.mxu0 0.0
  %461 = vmatpush1.msra.mxu0 0.0
  %462 = vmatprep.mubr.f32.mxu0 0.0
  %463 = vmatmul.mubr.f32.gmra.mrb[0].mxu0 %v393
  %v464 = vpop.f32.mrb[0].mxu0
  %v465 = vadd.f32 0.0, %v464
  %v466 = vpop.f32.mrb[0].mxu0
  %467 = vdwg.mxu0
  %v468 = vadd.f32 %v332, %v465
  %s469 = scalar_lea.vmem %s2, 48
  %v470 = vld [vmem:[%s469] sm:$0xff]
  %v471 = vld [vmem:[%s469 + $0x8] sm:$0x1]
  %472 = vset.pattern.permute.xlu0 3
  %473 = vperm.xlu0 %472, %v71
  %v474 = vpop.permute.xlu0 %473
  %v476 = vmul.f32 %v474, %v30
  %v477 = vmul.f32 %v474, %v31
  %478 = vrot.lane.b32.xlu0 %v19, 127
  %v479 = vpop.permute.xlu0 %478
  %v481 = vsub.f32 %v19, %v479
  %483 = vset.pattern.permute.xlu0 3
  %484 = vperm.xlu0 %483, %v481
  %v485 = vpop.permute.xlu0 %484
  %v487 = vlaneseq
  %v488 = vshrl.u32 %v487, 7
  %v489 = vsub.s32 0, %v488
  %v490 = vrot.slane %v485, %v489
  %v491 = vmul.f32 %v490, %v29
  %v492 = vadd.f32 %v476, %v491
  %v493 = vadd.f32 %v477, %v491
  %v494 = vmul.f32 %v492, %v65
  %v495 = vmul.f32 %v493, %v65
  %497 = vset.pattern.permute.xlu0 0
  %498 = vperm.xlu0 %497, %v470
  %v499 = vpop.permute.xlu0 %498
  %502 = vset.pattern.permute.xlu0 0
  %503 = vperm.xlu0 %502, %v471
  %v504 = vpop.permute.xlu0 %503
  %v506 = vmul.f32 %v494, %v499
  %v507 = vmul.f32 %v495, %v504
  %508 = vset.pattern.permute.xlu0 1
  %509 = vperm.xlu0 %508, %v470
  %v510 = vpop.permute.xlu0 %509
  %512 = vset.pattern.permute.xlu0 1
  %513 = vperm.xlu0 %512, %v471
  %v514 = vpop.permute.xlu0 %513
  %v516 = vadd.f32 %v506, %v510
  %v517 = vadd.f32 %v507, %v514
  %vm518 = vcmp.ge.f32.partialorder %v516, 0.0
  %vm519 = vcmp.ge.f32.partialorder %v517, 0.0
  %v520 = vmul.f32 %v516, 0.01
  %v521 = vmul.f32 %v517, 0.01
  %v522 = vsel %vm518, %v516, %v520
  %v523 = vsel %vm519, %v517, %v521
  %s524 = scalar_lea.vmem %s3, 24
  %v525 = vld [vmem:[%s524] sm:$0x3f]
  %v527 = vsel %vm182, %v525, 0
  %v530 = vsel %vm20, %v523, 0
  %532 = vmatprep.subr.mxu0 0.0
  %533 = vmatpush1.msra.mxu0 %v522
  %534 = vmatprep.subr.mxu0 0.0
  %535 = vmatpush1.msra.mxu0 %v530
  %536 = vmatprep.subr.mxu0 0.0
  %537 = vmatpush1.msra.mxu0 0.0
  %538 = vmatprep.subr.mxu0 0.0
  %539 = vmatpush1.msra.mxu0 0.0
  %540 = vmatprep.subr.mxu0 0.0
  %541 = vmatpush1.msra.mxu0 0.0
  %542 = vmatprep.subr.mxu0 0.0
  %543 = vmatpush1.msra.mxu0 0.0
  %544 = vmatprep.subr.mxu0 0.0
  %545 = vmatpush1.msra.mxu0 0.0
  %546 = vmatprep.subr.mxu0 0.0
  %547 = vmatpush1.msra.mxu0 0.0
  %548 = vmatprep.subr.mxu0 0.0
  %549 = vmatpush1.msra.mxu0 0.0
  %550 = vmatprep.subr.mxu0 0.0
  %551 = vmatpush1.msra.mxu0 0.0
  %552 = vmatprep.subr.mxu0 0.0
  %553 = vmatpush1.msra.mxu0 0.0
  %554 = vmatprep.subr.mxu0 0.0
  %555 = vmatpush1.msra.mxu0 0.0
  %556 = vmatprep.subr.mxu0 0.0
  %557 = vmatpush1.msra.mxu0 0.0
  %558 = vmatprep.subr.mxu0 0.0
  %559 = vmatpush1.msra.mxu0 0.0
  %560 = vmatprep.subr.mxu0 0.0
  %561 = vmatpush1.msra.mxu0 0.0
  %562 = vmatprep.subr.mxu0 0.0
  %563 = vmatpush1.msra.mxu0 0.0
  %564 = vmatprep.subr.mxu0 0.0
  %565 = vmatpush1.msra.mxu0 0.0
  %566 = vmatprep.subr.mxu0 0.0
  %567 = vmatpush1.msra.mxu0 0.0
  %568 = vmatprep.subr.mxu0 0.0
  %569 = vmatpush1.msra.mxu0 0.0
  %570 = vmatprep.subr.mxu0 0.0
  %571 = vmatpush1.msra.mxu0 0.0
  %572 = vmatprep.subr.mxu0 0.0
  %573 = vmatpush1.msra.mxu0 0.0
  %574 = vmatprep.subr.mxu0 0.0
  %575 = vmatpush1.msra.mxu0 0.0
  %576 = vmatprep.subr.mxu0 0.0
  %577 = vmatpush1.msra.mxu0 0.0
  %578 = vmatprep.subr.mxu0 0.0
  %579 = vmatpush1.msra.mxu0 0.0
  %580 = vmatprep.subr.mxu0 0.0
  %581 = vmatpush1.msra.mxu0 0.0
  %582 = vmatprep.subr.mxu0 0.0
  %583 = vmatpush1.msra.mxu0 0.0
  %584 = vmatprep.subr.mxu0 0.0
  %585 = vmatpush1.msra.mxu0 0.0
  %586 = vmatprep.subr.mxu0 0.0
  %587 = vmatpush1.msra.mxu0 0.0
  %588 = vmatprep.subr.mxu0 0.0
  %589 = vmatpush1.msra.mxu0 0.0
  %590 = vmatprep.subr.mxu0 0.0
  %591 = vmatpush1.msra.mxu0 0.0
  %592 = vmatprep.subr.mxu0 0.0
  %593 = vmatpush1.msra.mxu0 0.0
  %594 = vmatprep.subr.mxu0 0.0
  %595 = vmatpush1.msra.mxu0 0.0
  %596 = vmatprep.mubr.f32.mxu0 0.0
  %597 = vmatmul.mubr.f32.gmra.mrb[0].mxu0 %v527
  %v598 = vpop.f32.mrb[0].mxu0
  %v599 = vadd.f32 0.0, %v598
  %v600 = vpop.f32.mrb[0].mxu0
  %601 = vdwg.mxu0
  %v602 = vadd.f32 %v468, %v599
  %603 = vst [vmem:[%s4] sm:$0x3f] %v602
  // Predicated region
  $region18: #{eval_head_forward_fm.1} parent=0 // pred_check
    _
  $region19: #{eval_head_forward_fm.1} parent=0 // pred_check_branch
    %605 = sbr.rel (0) target = $region21
  $region20: #{eval_head_forward_fm.1} parent=0 // pred_region
    _
  $region21: #{eval_head_forward_fm.1} parent=0 // pred_fallthru
    _
  // Predicated region
  $region22: #{eval_head_forward_fm.1} parent=0 // pred_check
    _
  $region23: #{eval_head_forward_fm.1} parent=0 // pred_check_branch
    %607 = sbr.rel (0) target = $region25
  $region24: #{eval_head_forward_fm.1} parent=0 // pred_region
    _
  $region25: #{eval_head_forward_fm.1} parent=0 // pred_fallthru
    _

</llo_original>
